<compile_context>
chip_gen: v6e
topology: v6e:2x2x1
jax: 0.10.0
libtpu: 0.0.40
codegen_flags: <defaults>
</compile_context>

<pallas_src>
import math
import functools

import jax
import jax.numpy as jnp
from jax import lax
from jax.experimental import pallas as pl
from jax.experimental.pallas import tpu as pltpu


# ----------------------------- Pallas kernel ------------------------------ #
def _attn_kernel(x_ref, w_ref, pb_ref, o_ref, *, dqk, dv, bt, unroll):
    # One grid step = one head x `bt` batch elements.  Grid is (heads, batch_blocks)
    # with heads slowest, so w_ref / pb_ref stay VMEM-resident across the batch sweep.
    w = w_ref[0]                                    # (Dtot, C) bf16
    pb = pb_ref[0].astype(jnp.float32)              # (Nk, Nq) f32, upcast once per grid step

    def body(i, carry):
        x = x_ref[i]                                # (C, N) bf16

        # Fused Q|K|V projection: (Dtot, C) @ (C, N) -> (Dtot, N), f32 accumulation.
        # (SDPA scale is already folded into the Q rows of w.)
        qkv = jnp.dot(w, x, preferred_element_type=jnp.float32)
        # Keep qkv f32 so the Dqk=8 row slices stay tile-aligned; cast the slices to
        # bf16 so both attention matmuls run at native MXU rate.
        qT = qkv[:dqk].astype(jnp.bfloat16)         # (Dqk, Nq)
        kT = qkv[dqk:2 * dqk].astype(jnp.bfloat16)  # (Dqk, Nk)
        vT = qkv[2 * dqk:].astype(jnp.bfloat16)     # (Dv,  Nk)

        # Transposed scores: sT[j, i] = k_j . q_i  (keys on sublanes, queries on lanes).
        # Contract over the Dqk axis of both operands -> MXU-native transposed-LHS form,
        # no (N, Dqk) transpose materialized.
        s = lax.dot_general(kT, qT, (((0,), (0,)), ((), ())),
                            preferred_element_type=jnp.float32)      # (Nk, Nq) f32
        s = s + pb

        # Softmax over keys == over the sublane axis in this layout.  The numerator is
        # left unnormalized; normalization happens after P.V on the (Dv, Nq) output.
        m = jnp.max(s, axis=0, keepdims=True)                        # (1, Nq)
        p = jnp.exp(s - m)                                           # (Nk, Nq) f32
        l = jnp.sum(p, axis=0, keepdims=True)                        # (1, Nq)

        # Standard-form MXU matmul (Dv, Nk) @ (Nk, Nq), then one Dv*Nq normalize pass
        # using the EUP reciprocal (instead of an N^2 multiply on the probabilities).
        o = lax.dot_general(vT, p.astype(jnp.bfloat16),
                            (((1,), (0,)), ((), ())),
                            preferred_element_type=jnp.float32)      # (Dv, Nq)
        o = o * pl.reciprocal(l, approx=True)
        o_ref[i, 0, :, :] = o.astype(o_ref.dtype)
        return carry

    # fori_loop (not a static Python unroll) bounds the live set of the (N, N)
    # temporaries to a single batch element; fully unroll only when they are tiny.
    lax.fori_loop(0, bt, body, 0, unroll=unroll)


# --------------------------- VMEM / tiling sizing -------------------------- #
def _tpu_vmem_capacity_bytes():
    """Physical per-core VMEM (v5e/v6e: 128 MiB, v7x: 64 MiB); conservative fallback."""
    try:
        cap = getattr(pltpu.get_tpu_info(), "vmem_capacity_bytes", None)
        if cap:
            return int(cap)
    except Exception:   # pragma: no cover - interpret mode / API drift
        pass
    return 64 * 1024 * 1024


def _vmem_bytes_estimate(bt, C, N, dtot, dv):
    """Rough per-grid-step footprint: pipeline buffers + in-kernel temporaries."""
    pipeline = (2 * bt * C * N * 2          # x blocks, bf16, double-buffered
                + 2 * dtot * C * 2          # fused weights, bf16
                + 2 * N * N * 2             # pos_bias block, bf16
                + 2 * bt * dv * N * 2)      # output blocks, bf16
    scratch = (N * N * 4                    # pos_bias upcast (loop-invariant)
               + 3 * N * N * 4              # scores / exp / working copies, f32
               + N * N * 2                  # probabilities recast to bf16 for the MXU
               + (2 * dtot + 2 * dv + 4) * N * 4)   # qkv, q/k/v bf16 copies, output rows
    return pipeline + scratch


def _pick_bt(B, C, N, dtot, dv, budget, max_bt=8):
    """Largest divisor of B that is <= max_bt, keeps >= 2 batch blocks (so the parallel
    batch axis can shard across v7x's two TensorCores) and fits the VMEM budget."""
    for bt in range(min(B, max_bt), 0, -1):
        if (B % bt == 0 and B // bt >= 2
                and _vmem_bytes_estimate(bt, C, N, dtot, dv) <= budget):
            return bt
    return 1


# ------------------------------- pallas_call ------------------------------- #
def _fused_attention(xb, w_fused, pos_bias_t, *, dqk, dv):
    B, C, N = xb.shape
    heads, dtot, _ = w_fused.shape

    vmem_cap = _tpu_vmem_capacity_bytes()
    budget = vmem_cap * 3 // 4                        # headroom for Mosaic internal scratch
    bt = _pick_bt(B, C, N, dtot, dv, budget)
    nb = B // bt
    est = _vmem_bytes_estimate(bt, C, N, dtot, dv)
    vmem_limit = int(min(budget, max(32 << 20, 2 * est)))

    flops = B * heads * (2 * N * C * dtot + 2 * N * N * dqk + 2 * N * N * dv)
    transcendentals = B * heads * (N * N + N)
    bytes_accessed = (heads * B * C * N * 2           # x (bf16), re-fetched once per head
                      + heads * dtot * C * 2          # fused weights (bf16)
                      + heads * N * N * 2             # pos_bias (bf16), once per head
                      + B * heads * dv * N * 2)       # output (bf16)

    kernel = functools.partial(_attn_kernel, dqk=dqk, dv=dv, bt=bt,
                               unroll=bt if N <= 128 else 1)

    return pl.pallas_call(
        kernel,
        out_shape=jax.ShapeDtypeStruct((B, heads, dv, N), jnp.bfloat16),
        grid_spec=pltpu.PrefetchScalarGridSpec(
            num_scalar_prefetch=0,
            # heads outermost / slowest -> fused weights + pos_bias stay VMEM-resident
            # while the (cheaper) x block is streamed over the batch.
            grid=(heads, nb),
            in_specs=[
                pl.BlockSpec((bt, C, N), lambda hi, bi: (bi, 0, 0)),     # x
                pl.BlockSpec((1, dtot, C), lambda hi, bi: (hi, 0, 0)),   # fused QKV weight
                pl.BlockSpec((1, N, N), lambda hi, bi: (hi, 0, 0)),      # pos bias (K,Q)
            ],
            out_specs=pl.BlockSpec((bt, 1, dv, N), lambda hi, bi: (bi, hi, 0, 0)),
        ),
        compiler_params=pltpu.CompilerParams(
            dimension_semantics=("parallel", "parallel"),
            vmem_limit_bytes=vmem_limit),
        cost_estimate=pl.CostEstimate(
            flops=flops, transcendentals=transcendentals,
            bytes_accessed=bytes_accessed),
    )(xb, w_fused, pos_bias_t)


# ------------------------------ module glue -------------------------------- #
def attention_linear_operator_2d(x, w_qk, w_v, pos_bias, chan_bias, heads):
    """x: (b, s, c, h, w) float32.  Returns (b, s, out_channels, h, w) float32."""
    b, s, c, h, w = x.shape
    out_channels = w_v.shape[0]
    if c % heads != 0 or out_channels % heads != 0:
        raise ValueError(
            f"in/out channels ({c}, {out_channels}) must be divisible by heads={heads}")
    dqk = c // heads
    dv = out_channels // heads
    N = h * w
    B = b * s

    # (b, s, c, h, w) -> (B, C, N): pure reshape (adjacent axes merged), no HBM transpose.
    # TODO(synk): if production N = h*w is < 128 or not a multiple of 128, fold heads
    # into the kernel body (or pack batch elements along lanes) to keep the lane axis
    # dense; this test uses N = 256.
    xb = x.reshape(B, c, N).astype(jnp.bfloat16)

    # qk conv weight (2*c, c): out-channel index decomposes as (split, head, head_dim).
    # Fold the SDPA scale (1/sqrt(Dqk)) into the Q rows (one-time, tiny) and fuse the
    # per-head q, k, v slabs into one (heads, 2*Dqk+Dv, C) bf16 weight slab.
    scale = 1.0 / math.sqrt(dqk)        # PyTorch SDPA default scale = 1/sqrt(E_q)
    wq = w_qk[:c].reshape(heads, dqk, c) * scale
    wk = w_qk[c:].reshape(heads, dqk, c)
    wv = w_v.reshape(heads, dv, c)
    w_fused = jnp.concatenate([wq, wk, wv], axis=1).astype(jnp.bfloat16)

    # Kernel uses a (key, query) scores layout -> transpose the additive bias once
    # outside the kernel and ship it as bf16.
    pos_bias_t = jnp.transpose(pos_bias, (0, 2, 1)).astype(jnp.bfloat16)

    out = _fused_attention(xb, w_fused, pos_bias_t, dqk=dqk, dv=dv)  # (B, heads, Dv, N)

    # (B, heads, Dv, N) -> (b, s, heads*Dv, h, w): again a pure reshape, no transpose.
    out = out.reshape(b, s, heads * dv, h, w).astype(jnp.float32)
    if chan_bias is not None:
        out = out + chan_bias[None, None]       # (out_channels, 1, 1) broadcast, f32
    return out


# TODO(synk): FixedCPB2d source was not provided; this is a deterministic log-spaced
# continuous-position-bias stand-in (Swin-v2 style 2-layer MLP on log-scaled relative
# coordinates) producing the (heads, N, N) attn_mask.
def fixed_cpb_2d(key, in_channels, heads, height, width):
    yy, xx = jnp.meshgrid(jnp.arange(height), jnp.arange(width), indexing="ij")
    coords = jnp.stack([yy.reshape(-1), xx.reshape(-1)], axis=-1).astype(jnp.float32)
    rel = coords[:, None, :] - coords[None, :, :]                   # (N, N, 2)
    rel = jnp.sign(rel) * jnp.log2(1.0 + jnp.abs(rel)) / jnp.log2(8.0)
    k1, k2 = jax.random.split(key)
    w1 = jax.random.normal(k1, (2, in_channels), jnp.float32) * 0.1
    w2 = jax.random.normal(k2, (in_channels, heads), jnp.float32) * 0.1
    bias = jax.nn.relu(rel @ w1) @ w2                               # (N, N, heads)
    return jnp.transpose(bias, (2, 0, 1))                           # (heads, N, N)


def reference_forward(x, w_qk, w_v, pos_bias, chan_bias, heads):
    """Pure-JAX (f32) reference of the PyTorch forward for correctness checking."""
    b, s, c, h, w = x.shape
    out_channels = w_v.shape[0]
    dqk, dv, N, B = c // heads, out_channels // heads, h * w, b * s
    xb = x.reshape(B, c, N).transpose(0, 2, 1)
    wq = w_qk[:c].reshape(heads, dqk, c).transpose(0, 2, 1)
    wk = w_qk[c:].reshape(heads, dqk, c).transpose(0, 2, 1)
    wvh = w_v.reshape(heads, dv, c).transpose(0, 2, 1)
    q = jnp.einsum("bnc,hcd->bhnd", xb, wq)
    k = jnp.einsum("bnc,hcd->bhnd", xb, wk)
    v = jnp.einsum("bnc,hcd->bhnd", xb, wvh)
    scores = jnp.einsum("bhnd,bhmd->bhnm", q, k) / math.sqrt(dqk) + pos_bias[None]
    p = jax.nn.softmax(scores, axis=-1)
    out = jnp.einsum("bhnm,bhmd->bhnd", p, v)
    out = out.reshape(b, s, heads, h, w, dv).transpose(0, 1, 2, 5, 3, 4)
    out = out.reshape(b, s, heads * dv, h, w)
    return out + chan_bias[None, None]


if __name__ == "__main__":
    # Small shapes consistent with the module: v is (batch, seq, C, H, W).
    batch, seq = 2, 2
    in_channels, out_channels = 16, 16
    heads = 2
    H = W = 16      # N = H*W = 256: a multiple of 128 so every lane-axis op is dense

    key = jax.random.PRNGKey(0)
    kx, kqk, kv, kb, kcpb = jax.random.split(key, 5)

    x = jax.random.normal(kx, (batch, seq, in_channels, H, W), jnp.float32)

    # Conv2d(in, 2*in, 1, bias=False) weight (2*in, in, 1, 1) -> (2*in, in),
    # kaiming-uniform-like deterministic init with bound 1/sqrt(fan_in).
    bound = 1.0 / math.sqrt(in_channels)
    w_qk = jax.random.uniform(kqk, (2 * in_channels, in_channels), jnp.float32,
                              -bound, bound)
    w_v = jax.random.uniform(kv, (out_channels, in_channels), jnp.float32,
                             -bound, bound)
    # LinearOperator2dBase bias: (out_channels, 1, 1), uniform(-1/sqrt(in), 1/sqrt(in))
    chan_bias = jax.random.uniform(kb, (out_channels, 1, 1), jnp.float32,
                                   -bound, bound)
    pos_bias = fixed_cpb_2d(kcpb, in_channels, heads, H, W)          # (heads, N, N)

    out = attention_linear_operator_2d(x, w_qk, w_v, pos_bias, chan_bias, heads)
    out = jax.block_until_ready(out)

    ref = reference_forward(x, w_qk, w_v, pos_bias, chan_bias, heads)
    assert out.shape == (batch, seq, out_channels, H, W), out.shape
    err = float(jnp.max(jnp.abs(out - ref)))
    rel = float(jnp.linalg.norm(out - ref) / jnp.linalg.norm(ref))
    # bf16 activations/weights/bias/probabilities/output (f32 MXU accumulation) plus the
    # approx EUP reciprocal in the softmax normalization vs an all-f32 reference.
    assert err < 3e-2 and rel < 3e-2, (err, rel)

    print("KERNEL_OK")
</pallas_src>

<mosaic_0001>
module attributes {stable_mosaic.version = 11 : i64} {
  func.func @_attn_kernel(%arg0: i32, %arg1: i32, %arg2: memref<2x16x256xbf16, #tpu.memory_space<vmem>>, %arg3: memref<1x24x16xbf16, #tpu.memory_space<vmem>>, %arg4: memref<1x256x256xbf16, #tpu.memory_space<vmem>>, %arg5: memref<2x1x8x256xbf16, #tpu.memory_space<vmem>>) attributes {dimension_semantics = [#tpu.dimension_semantics<parallel>, #tpu.dimension_semantics<parallel>], iteration_bounds = array<i64: 2, 2>, scalar_prefetch = 0 : i64, scratch_operands = 0 : i64, tpu.core_type = #tpu.core_type<tc>, window_params = [{transform_indices = @transform_0, window_bounds = array<i64: 2, 16, 256>}, {transform_indices = @transform_1, window_bounds = array<i64: 1, 24, 16>}, {transform_indices = @transform_2, window_bounds = array<i64: 1, 256, 256>}, {transform_indices = @transform_3, window_bounds = array<i64: 2, 1, 8, 256>}]} {
    %c0 = arith.constant 0 : index
    %c0_0 = arith.constant 0 : index
    %c0_1 = arith.constant 0 : index
    %0 = vector.load %arg3[%c0, %c0_0, %c0_1] : memref<1x24x16xbf16, #tpu.memory_space<vmem>>, vector<1x24x16xbf16>
    %1 = vector.shape_cast %0 : vector<1x24x16xbf16> to vector<24x16xbf16>
    %c0_2 = arith.constant 0 : index
    %c0_3 = arith.constant 0 : index
    %c0_4 = arith.constant 0 : index
    %2 = vector.load %arg4[%c0_2, %c0_3, %c0_4] : memref<1x256x256xbf16, #tpu.memory_space<vmem>>, vector<1x256x256xbf16>
    %3 = vector.shape_cast %2 : vector<1x256x256xbf16> to vector<256x256xbf16>
    %4 = arith.extf %3 : vector<256x256xbf16> to vector<256x256xf32>
    %c0_i32 = arith.constant 0 : i32
    %c2_i32 = arith.constant 2 : i32
    %5 = arith.addi %c0_i32, %c2_i32 : i32
    %c1_i32 = arith.constant 1 : i32
    scf.for %arg6 = %c0_i32 to %5 step %c1_i32  : i32 {
      %6 = arith.index_cast %arg6 : i32 to index
      %c0_6 = arith.constant 0 : index
      %c0_7 = arith.constant 0 : index
      %7 = vector.load %arg2[%6, %c0_6, %c0_7] : memref<2x16x256xbf16, #tpu.memory_space<vmem>>, vector<1x16x256xbf16>
      %8 = vector.shape_cast %7 : vector<1x16x256xbf16> to vector<16x256xbf16>
      %cst = arith.constant dense<0.000000e+00> : vector<24x256xf32>
      %9 = tpu.matmul %1, %8, %cst {dimension_numbers = #tpu.dot_dimension_numbers<[1], [0], [0], [1], [0, 0, 1, 1], [], []>} : vector<24x16xbf16>, vector<16x256xbf16>, vector<24x256xf32> -> vector<24x256xf32>
      %10 = vector.extract_strided_slice %9 {offsets = [0, 0], sizes = [8, 256], strides = [1, 1]} : vector<24x256xf32> to vector<8x256xf32>
      %11 = arith.truncf %10 : vector<8x256xf32> to vector<8x256xbf16>
      %12 = vector.extract_strided_slice %9 {offsets = [8, 0], sizes = [8, 256], strides = [1, 1]} : vector<24x256xf32> to vector<8x256xf32>
      %13 = arith.truncf %12 : vector<8x256xf32> to vector<8x256xbf16>
      %14 = vector.extract_strided_slice %9 {offsets = [16, 0], sizes = [8, 256], strides = [1, 1]} : vector<24x256xf32> to vector<8x256xf32>
      %15 = arith.truncf %14 : vector<8x256xf32> to vector<8x256xbf16>
      %cst_8 = arith.constant dense<0.000000e+00> : vector<256x256xf32>
      %16 = tpu.matmul %13, %11, %cst_8 {dimension_numbers = #tpu.dot_dimension_numbers<[0], [0], [1], [1], [0, 1, 1, 1], [], []>} : vector<8x256xbf16>, vector<8x256xbf16>, vector<256x256xf32> -> vector<256x256xf32>
      %17 = arith.addf %16, %4 : vector<256x256xf32>
      %cst_9 = arith.constant dense<0xFF800000> : vector<256xf32>
      %18 = vector.multi_reduction <maximumf>, %17, %cst_9 [0] : vector<256x256xf32> to vector<256xf32>
      %19 = vector.shape_cast %18 : vector<256xf32> to vector<1x256xf32>
      %20 = vector.broadcast %19 : vector<1x256xf32> to vector<256x256xf32>
      %21 = arith.subf %17, %20 : vector<256x256xf32>
      %22 = math.exp %21 : vector<256x256xf32>
      %cst_10 = arith.constant dense<0.000000e+00> : vector<256xf32>
      %23 = vector.multi_reduction <add>, %22, %cst_10 [0] : vector<256x256xf32> to vector<256xf32>
      %24 = vector.shape_cast %23 : vector<256xf32> to vector<1x256xf32>
      %25 = arith.truncf %22 : vector<256x256xf32> to vector<256x256xbf16>
      %cst_11 = arith.constant dense<0.000000e+00> : vector<8x256xf32>
      %26 = tpu.matmul %15, %25, %cst_11 {dimension_numbers = #tpu.dot_dimension_numbers<[1], [0], [0], [1], [0, 0, 1, 1], [], []>} : vector<8x256xbf16>, vector<256x256xbf16>, vector<8x256xf32> -> vector<8x256xf32>
      %27 = tpu.reciprocal %24 {approx = true} : vector<1x256xf32> -> vector<1x256xf32>
      %28 = vector.broadcast %27 : vector<1x256xf32> to vector<8x256xf32>
      %29 = arith.mulf %26, %28 : vector<8x256xf32>
      %30 = arith.truncf %29 : vector<8x256xf32> to vector<8x256xbf16>
      %31 = arith.index_cast %arg6 : i32 to index
      %c0_12 = arith.constant 0 : index
      %c0_13 = arith.constant 0 : index
      %c0_14 = arith.constant 0 : index
      %32 = vector.load %arg5[%31, %c0_12, %c0_13, %c0_14] : memref<2x1x8x256xbf16, #tpu.memory_space<vmem>>, vector<1x1x8x256xbf16>
      %33 = vector.shape_cast %32 : vector<1x1x8x256xbf16> to vector<8x256xbf16>
      %34 = vector.shape_cast %30 : vector<8x256xbf16> to vector<1x1x8x256xbf16>
      tpu.vector_store %arg5[%31, %c0_12, %c0_13, %c0_14], %34 {strides = array<i32>} : memref<2x1x8x256xbf16, #tpu.memory_space<vmem>>, vector<1x1x8x256xbf16>,
    }
    %c2_i32_5 = arith.constant 2 : i32
    return
  }
  func.func @transform_0(%arg0: i32, %arg1: i32) -> (i32, i32, i32) {
    %c0_i32 = arith.constant 0 : i32
    %c0_i32_0 = arith.constant 0 : i32
    %c0_i32_1 = arith.constant 0 : i32
    return %arg1, %c0_i32, %c0_i32_0 : i32, i32, i32
  }
  func.func @transform_1(%arg0: i32, %arg1: i32) -> (i32, i32, i32) {
    %c0_i32 = arith.constant 0 : i32
    %c0_i32_0 = arith.constant 0 : i32
    %c0_i32_1 = arith.constant 0 : i32
    return %arg0, %c0_i32, %c0_i32_0 : i32, i32, i32
  }
  func.func @transform_2(%arg0: i32, %arg1: i32) -> (i32, i32, i32) {
    %c0_i32 = arith.constant 0 : i32
    %c0_i32_0 = arith.constant 0 : i32
    %c0_i32_1 = arith.constant 0 : i32
    return %arg0, %c0_i32, %c0_i32_0 : i32, i32, i32
  }
  func.func @transform_3(%arg0: i32, %arg1: i32) -> (i32, i32, i32, i32) {
    %c0_i32 = arith.constant 0 : i32
    %c0_i32_0 = arith.constant 0 : i32
    %c0_i32_1 = arith.constant 0 : i32
    return %arg1, %arg0, %c0_i32, %c0_i32_0 : i32, i32, i32, i32
  }
}

</mosaic_0001>

<llo_original>
// kernel: tpu_custom_call.1
$region0: #{tpu_custom_call.1}
  #allocation0 [shape = 'u32[]', space=smem, size = 0x4, offset = 0x4, fixed_abs, tag = 'smem constant byte address 0x4 - core index']
  #allocation1 [shape = 'u32[144,128]{1,0:T(1,128)}', space=vmem, size = 0x12000, scoped, tag = 'internal scratch']
  %s0 = inlined_call_operand.hbm [shape: bf16[4,16,256], index: 0, kind: input, shape index: {}]
  %s1 = inlined_call_operand.vmem [shape: bf16[2,24,16], index: 1, kind: input, shape index: {}]
  %s2 = inlined_call_operand.hbm [shape: bf16[2,256,256], index: 2, kind: input, shape index: {}]
  %s3 = inlined_call_operand.hbm [shape: bf16[4,2,8,256], index: 3, kind: output, shape index: {}]
  %s4 = sld [smem:[#allocation0]]
  $region60: #{tpu_custom_call.1} parent=0
    _
  %s6 = ssub.s32 1, %s4
  %s7 = scalar_select 0, %s6, %s4
  $region1: #{tpu_custom_call.1} parent=0
    #allocation2 [shape = 'u8[32768]{0}', space=vmem, size = 0x8000, scoped, tag = 'input window, operand 0']
    #allocation3 [shape = 's32[2]{0}', space=sflag, size = 0x8, scoped, tag = 'scoped memory for tpu_custom_call.1']
    #allocation4 [shape = 's32[2]{0}', space=sflag, size = 0x8, scoped, tag = 'scoped memory for tpu_custom_call.1']
    #allocation5 [shape = 'u8[262144]{0}', space=vmem, size = 0x40000, scoped, tag = 'input window, operand 2']
    #allocation6 [shape = 's32[2]{0}', space=sflag, size = 0x8, scoped, tag = 'scoped memory for tpu_custom_call.1']
    #allocation7 [shape = 'u8[16384]{0}', space=vmem, size = 0x4000, scoped, tag = 'output window, operand 0']
    %8 = vsyncpa [#allocation3], 0
    %s9 = scalar_lea.sflag [#allocation3], 1
    %10 = vsyncpa %s9, 0
    %11 = vsyncpa [#allocation6], 0
    %s12 = scalar_lea.sflag [#allocation6], 1
    %13 = vsyncpa %s12, 0
    %14 = vsyncpa [#allocation4], 0
    %s15 = scalar_lea.sflag [#allocation4], 1
    %16 = vsyncpa %s15, 0
    loop: start=0, step=1, limit=6
    $region2: #{tpu_custom_call.1} parent=1 // loop_pre_header
      _
    $region3: #{tpu_custom_call.1} parent=1 // loop_header
      %s18 = sphi 0, %s22
      %p19 = scmp.ge.s32.totalorder %s18, 6
      %s25 = sphi 0, %s37
      %s26 = sphi 0, %s33
      %s27 = sphi 0, %s25
      %s28 = sphi 0, %s26
      %s29 = sphi 0, %s27
      %s30 = sphi 0, %s28
      %s40 = sphi 0, %s42
      %s43 = sphi 0, %s40
      %s44 = sphi 0, %s43
      %s60 = sphi 0, %s44
      %s66 = sphi 0, %s68
      %s69 = sphi 0, %s66
      %s70 = sphi 0, %s69
      %s86 = sphi 0, %s70
      %s92 = sphi 0, %s94
      %s95 = sphi 0, %s92
      %s96 = sphi 0, %s95
      %s112 = sphi 0, %s96
      %s120 = sphi 0, %s122
      %s123 = sphi 0, %s120
      %s124 = sphi 0, %s123
      %s140 = sphi 0, %s124
    $region4: #{tpu_custom_call.1} parent=1 // loop_header_branch
      %21 = sbr.rel (%p19) target = $region8
    $region5: #{tpu_custom_call.1} parent=1 // loop_body
      %s23 = ssub.s32 %s18, 1
      %s24 = ssub.s32 %s18, 2
      %s31 = sadd.s32 1, %s26
      %p32 = scmp.ge.s32.totalorder %s31, 2
      %s33 = scalar_select %p32, 0, %s31
      %s34 = sadd.s32 1, %s25
      %s35 = scalar_select %p32, %s34, %s25
      %p36 = scmp.ge.s32.totalorder %s35, 2
      %s37 = scalar_select %p36, 0, %s35
      %s38 = ssub.s32 %s26, %s33
      %p39 = scmp.eq.s32.totalorder %s38, 0
      %s41 = sadd.s32 %s40, 1
      %s42 = scalar_select %p39, %s40, %s41
      %p45 = pneg %p39
      %p46 = scmp.eq.s32.totalorder %s18, 3
      %p47 = por %p45, %p46
      %p48 = scmp.ne.s32.totalorder %s40, %s43
      %p49 = scmp.eq.s32.totalorder %s18, 0
      %p50 = por %p48, %p49
      %p51 = scmp.ne.s32.totalorder %s40, %s43
      %p52 = scmp.eq.s32.totalorder %s23, 3
      %p53 = por %p51, %p52
      %p54 = scmp.ne.s32.totalorder %s43, %s44
      %p55 = scmp.eq.s32.totalorder %s23, 0
      %p56 = por %p54, %p55
      %p57 = scmp.ne.s32.totalorder %s43, %s44
      %p58 = scmp.eq.s32.totalorder %s24, 3
      %p59 = por %p57, %p58
      %p61 = scmp.ne.s32.totalorder %s44, %s60
      %p62 = scmp.eq.s32.totalorder %s24, 0
      %p63 = por %p61, %p62
      %s64 = ssub.s32 %s25, %s37
      %p65 = scmp.eq.s32.totalorder %s64, 0
      %s67 = sadd.s32 %s66, 1
      %s68 = scalar_select %p65, %s66, %s67
      %p71 = pneg %p65
      %p72 = scmp.eq.s32.totalorder %s18, 3
      %p73 = por %p71, %p72
      %p74 = scmp.ne.s32.totalorder %s66, %s69
      %p75 = scmp.eq.s32.totalorder %s18, 0
      %p76 = por %p74, %p75
      %p77 = scmp.ne.s32.totalorder %s66, %s69
      %p78 = scmp.eq.s32.totalorder %s23, 3
      %p79 = por %p77, %p78
      %p80 = scmp.ne.s32.totalorder %s69, %s70
      %p81 = scmp.eq.s32.totalorder %s23, 0
      %p82 = por %p80, %p81
      %p83 = scmp.ne.s32.totalorder %s69, %s70
      %p84 = scmp.eq.s32.totalorder %s24, 3
      %p85 = por %p83, %p84
      %p87 = scmp.ne.s32.totalorder %s70, %s86
      %p88 = scmp.eq.s32.totalorder %s24, 0
      %p89 = por %p87, %p88
      %s90 = ssub.s32 %s25, %s37
      %p91 = scmp.eq.s32.totalorder %s90, 0
      %s93 = sadd.s32 %s92, 1
      %s94 = scalar_select %p91, %s92, %s93
      %p97 = pneg %p91
      %p98 = scmp.eq.s32.totalorder %s18, 3
      %p99 = por %p97, %p98
      %p100 = scmp.ne.s32.totalorder %s92, %s95
      %p101 = scmp.eq.s32.totalorder %s18, 0
      %p102 = por %p100, %p101
      %p103 = scmp.ne.s32.totalorder %s92, %s95
      %p104 = scmp.eq.s32.totalorder %s23, 3
      %p105 = por %p103, %p104
      %p106 = scmp.ne.s32.totalorder %s95, %s96
      %p107 = scmp.eq.s32.totalorder %s23, 0
      %p108 = por %p106, %p107
      %p109 = scmp.ne.s32.totalorder %s95, %s96
      %p110 = scmp.eq.s32.totalorder %s24, 3
      %p111 = por %p109, %p110
      %p113 = scmp.ne.s32.totalorder %s96, %s112
      %p114 = scmp.eq.s32.totalorder %s24, 0
      %p115 = por %p113, %p114
      %s116 = ssub.s32 %s26, %s33
      %s117 = ssub.s32 %s25, %s37
      %s118 = sor.u32 %s116, %s117
      %p119 = scmp.eq.s32.totalorder %s118, 0
      %s121 = sadd.s32 %s120, 1
      %s122 = scalar_select %p119, %s120, %s121
      %p125 = pneg %p119
      %p126 = scmp.eq.s32.totalorder %s18, 3
      %p127 = por %p125, %p126
      %p128 = scmp.ne.s32.totalorder %s120, %s123
      %p129 = scmp.eq.s32.totalorder %s18, 0
      %p130 = por %p128, %p129
      %p131 = scmp.ne.s32.totalorder %s120, %s123
      %p132 = scmp.eq.s32.totalorder %s23, 3
      %p133 = por %p131, %p132
      %p134 = scmp.ne.s32.totalorder %s123, %s124
      %p135 = scmp.eq.s32.totalorder %s23, 0
      %p136 = por %p134, %p135
      %p137 = scmp.ne.s32.totalorder %s123, %s124
      %p138 = scmp.eq.s32.totalorder %s24, 3
      %p139 = por %p137, %p138
      %p141 = scmp.ne.s32.totalorder %s124, %s140
      %p142 = scmp.eq.s32.totalorder %s24, 0
      %p143 = por %p141, %p142
      %p144 = scmp.le.s32.totalorder 1, %s18
      %p145 = scmp.lt.s32.totalorder %s18, 5
      %p146 = pnand %p144, %p145
      %p147 = pneg %p146
      // Predicated region
      $region9: #{tpu_custom_call.1} parent=5 // pred_check
        _
      $region10: #{tpu_custom_call.1} parent=5 // pred_check_branch
        %149 = sbr.rel (%p146) target = $region12
      $region11: #{tpu_custom_call.1} parent=5 // pred_region
        %s150 = ssub.s32 %s18, 1
      $region12: #{tpu_custom_call.1} parent=5 // pred_fallthru
        _
      %p151 = scmp.lt.s32.totalorder %s18, 4
      // Predicated region
      $region13: #{tpu_custom_call.1} parent=5 // pred_check
        %p152 = pneg %p151
      $region14: #{tpu_custom_call.1} parent=5 // pred_check_branch
        %154 = sbr.rel (%p152) target = $region16
      $region15: #{tpu_custom_call.1} parent=5 // pred_region
        // Predicated region
        $region17: #{tpu_custom_call.1} parent=15 // pred_check
          %p155 = pneg %p50
        $region18: #{tpu_custom_call.1} parent=15 // pred_check_branch
          %157 = sbr.rel (%p155) target = $region20
        $region19: #{tpu_custom_call.1} parent=15 // pred_region
          %s158 = sand.u32 %s40, 1
          %s159 = scalar_lea.sflag [#allocation3], %s158
          %s160 = sand.u32 %s40, 1
          %s161 = smul.addr %s160, 32
          %s162 = scalar_lea.vmem [#allocation2], %s161
          %s163 = smul.u32 2, %s26
          %s165 = ssub.s32 512, 512
          %166 = vsyncadd %s159, %s165
          %s167 = smul.addr %s163, 4
          %s168 = smul.addr %s167, 64
          %s169 = scalar_lea.hbm %s0, %s168
          %s170 = sshll.u32 %s162, 4
          %s171 = int_to_ptr.vmem [resolvable:$true] %s170
          %176 = dma.hbm_to_vmem [thread:$0]  %s169, 512, %s171, %s159, 128, 128, 8
        $region20: #{tpu_custom_call.1} parent=15 // pred_fallthru
          _
        // Predicated region
        $region21: #{tpu_custom_call.1} parent=15 // pred_check
          %p177 = pneg %p76
        $region22: #{tpu_custom_call.1} parent=15 // pred_check_branch
          %179 = sbr.rel (%p177) target = $region24
        $region23: #{tpu_custom_call.1} parent=15 // pred_region
          %p180 = scmp.lt.s32.totalorder %s25, 1
          %s181 = scalar_select %p180, %s25, 1
          %s182 = smul.addr %s181, 3
          %s183 = smul.addr %s182, 4
          %s184 = scalar_lea.vmem %s1, %s183
        $region24: #{tpu_custom_call.1} parent=15 // pred_fallthru
          _
        // Predicated region
        $region25: #{tpu_custom_call.1} parent=15 // pred_check
          %p185 = pneg %p102
        $region26: #{tpu_custom_call.1} parent=15 // pred_check_branch
          %187 = sbr.rel (%p185) target = $region28
        $region27: #{tpu_custom_call.1} parent=15 // pred_region
          %s188 = sand.u32 %s92, 1
          %s189 = scalar_lea.sflag [#allocation6], %s188
          %s190 = sand.u32 %s92, 1
          %s191 = smul.addr %s190, 256
          %s192 = scalar_lea.vmem [#allocation5], %s191
          %s194 = ssub.s32 4096, 4096
          %195 = vsyncadd %s189, %s194
          %s196 = smul.addr %s25, 64
          %s197 = smul.addr %s196, 64
          %s198 = scalar_lea.hbm %s2, %s197
          %s199 = sshll.u32 %s192, 4
          %s200 = int_to_ptr.vmem [resolvable:$true] %s199
          %205 = dma.hbm_to_vmem [thread:$0]  %s198, 4096, %s200, %s189, 128, 128, 8
        $region28: #{tpu_custom_call.1} parent=15 // pred_fallthru
          _
      $region16: #{tpu_custom_call.1} parent=5 // pred_fallthru
        _
      %p206 = scmp.le.s32.totalorder 1, %s18
      %p207 = scmp.lt.s32.totalorder %s18, 5
      %p208 = pnand %p206, %p207
      %p209 = pneg %p208
      // Predicated region
      $region29: #{tpu_custom_call.1} parent=5 // pred_check
        _
      $region30: #{tpu_custom_call.1} parent=5 // pred_check_branch
        %211 = sbr.rel (%p208) target = $region32
      $region31: #{tpu_custom_call.1} parent=5 // pred_region
        %s212 = ssub.s32 %s18, 1
        %s213 = sand.u32 %s43, 1
        %s214 = scalar_lea.sflag [#allocation3], %s213
        %s215 = sand.u32 %s43, 1
        %s216 = smul.addr %s215, 32
        %s217 = scalar_lea.vmem [#allocation2], %s216
        // Predicated region
        $region33: #{tpu_custom_call.1} parent=31 // pred_check
          %p218 = pneg %p56
        $region34: #{tpu_custom_call.1} parent=31 // pred_check_branch
          %220 = sbr.rel (%p218) target = $region36
        $region35: #{tpu_custom_call.1} parent=31 // pred_region
          %221 = dma.done %s214, 512
        $region36: #{tpu_custom_call.1} parent=31 // pred_fallthru
          _
        %s222 = sand.u32 %s95, 1
        %s223 = scalar_lea.sflag [#allocation6], %s222
        %s224 = sand.u32 %s95, 1
        %s225 = smul.addr %s224, 256
        %s226 = scalar_lea.vmem [#allocation5], %s225
        // Predicated region
        $region37: #{tpu_custom_call.1} parent=31 // pred_check
          %p227 = pneg %p108
        $region38: #{tpu_custom_call.1} parent=31 // pred_check_branch
          %229 = sbr.rel (%p227) target = $region40
        $region39: #{tpu_custom_call.1} parent=31 // pred_region
          %230 = dma.done %s223, 4096
        $region40: #{tpu_custom_call.1} parent=31 // pred_fallthru
          _
        %s231 = sand.u32 %s43, 1
        %s232 = scalar_lea.sflag [#allocation3], %s231
        %s233 = sand.u32 %s43, 1
        %s234 = smul.addr %s233, 32
        %s235 = scalar_lea.vmem [#allocation2], %s234
        %p236 = pneg %p56
        %p237 = pneg %p53
        %p238 = scmp.lt.s32.totalorder %s27, 1
        %s239 = scalar_select %p238, %s27, 1
        %s240 = smul.addr %s239, 3
        %s241 = smul.addr %s240, 4
        %s242 = scalar_lea.vmem %s1, %s241
        %p243 = pneg %p82
        %p244 = pneg %p79
        %s245 = sand.u32 %s95, 1
        %s246 = scalar_lea.sflag [#allocation6], %s245
        %s247 = sand.u32 %s95, 1
        %s248 = smul.addr %s247, 256
        %s249 = scalar_lea.vmem [#allocation5], %s248
        %p250 = pneg %p108
        %p251 = pneg %p105
        %p252 = pneg %p136
        %p253 = pneg %p133
        %s254 = sand.u32 %s123, 1
        %s255 = scalar_lea.sflag [#allocation4], %s254
        %s256 = sand.u32 %s123, 1
        %s257 = smul.addr %s256, 16
        %s258 = scalar_lea.vmem [#allocation7], %s257
        %s259 = smul.u32 2, %s28
        %p260 = scmp.lt.s32.totalorder %s27, 1
        %s261 = scalar_select %p260, %s27, 1
        %s262 = smul.addr %s261, 3
        %s263 = smul.addr %s262, 4
        %s264 = scalar_lea.vmem %s1, %s263
        %s265 = smul.u32 2, %s28
        %v267 = vld [vmem:[%s264] sm:$0xf]
        %v268 = vld [vmem:[%s264 + $0x4] sm:$0xf]
        %v269 = vld [vmem:[%s264 + $0x8] sm:$0xf]
        %v270 = vld [vmem:[%s226] sm:$0xff]
        %v271 = vld [vmem:[%s226 + $0x8] sm:$0xff]
        %v272 = vld [vmem:[%s226 + $0x10] sm:$0xff]
        %v273 = vld [vmem:[%s226 + $0x18] sm:$0xff]
        %v274 = vld [vmem:[%s226 + $0x20] sm:$0xff]
        %v275 = vld [vmem:[%s226 + $0x28] sm:$0xff]
        %v276 = vld [vmem:[%s226 + $0x30] sm:$0xff]
        %v277 = vld [vmem:[%s226 + $0x38] sm:$0xff]
        %v278 = vld [vmem:[%s226 + $0x40] sm:$0xff]
        %v279 = vld [vmem:[%s226 + $0x48] sm:$0xff]
        %v280 = vld [vmem:[%s226 + $0x50] sm:$0xff]
        %v281 = vld [vmem:[%s226 + $0x58] sm:$0xff]
        %v282 = vld [vmem:[%s226 + $0x60] sm:$0xff]
        %v283 = vld [vmem:[%s226 + $0x68] sm:$0xff]
        %v284 = vld [vmem:[%s226 + $0x70] sm:$0xff]
        %v285 = vld [vmem:[%s226 + $0x78] sm:$0xff]
        %v286 = vld [vmem:[%s226 + $0x80] sm:$0xff]
        %v287 = vld [vmem:[%s226 + $0x88] sm:$0xff]
        %v288 = vld [vmem:[%s226 + $0x90] sm:$0xff]
        %v289 = vld [vmem:[%s226 + $0x98] sm:$0xff]
        %v290 = vld [vmem:[%s226 + $0xa0] sm:$0xff]
        %v291 = vld [vmem:[%s226 + $0xa8] sm:$0xff]
        %v292 = vld [vmem:[%s226 + $0xb0] sm:$0xff]
        %v293 = vld [vmem:[%s226 + $0xb8] sm:$0xff]
        %v294 = vld [vmem:[%s226 + $0xc0] sm:$0xff]
        %v295 = vld [vmem:[%s226 + $0xc8] sm:$0xff]
        %v296 = vld [vmem:[%s226 + $0xd0] sm:$0xff]
        %v297 = vld [vmem:[%s226 + $0xd8] sm:$0xff]
        %v298 = vld [vmem:[%s226 + $0xe0] sm:$0xff]
        %v299 = vld [vmem:[%s226 + $0xe8] sm:$0xff]
        %v300 = vld [vmem:[%s226 + $0xf0] sm:$0xff]
        %v301 = vld [vmem:[%s226 + $0xf8] sm:$0xff]
        %v302 = vunpack.c.l.bf16 %v270
        %v303 = vunpack.c.h.bf16 %v270
        %v304 = vunpack.c.l.bf16 %v271
        %v305 = vunpack.c.h.bf16 %v271
        %v306 = vunpack.c.l.bf16 %v272
        %v307 = vunpack.c.h.bf16 %v272
        %v308 = vunpack.c.l.bf16 %v273
        %v309 = vunpack.c.h.bf16 %v273
        %v310 = vunpack.c.l.bf16 %v274
        %v311 = vunpack.c.h.bf16 %v274
        %v312 = vunpack.c.l.bf16 %v275
        %v313 = vunpack.c.h.bf16 %v275
        %v314 = vunpack.c.l.bf16 %v276
        %v315 = vunpack.c.h.bf16 %v276
        %v316 = vunpack.c.l.bf16 %v277
        %v317 = vunpack.c.h.bf16 %v277
        %v318 = vunpack.c.l.bf16 %v278
        %v319 = vunpack.c.h.bf16 %v278
        %v320 = vunpack.c.l.bf16 %v279
        %v321 = vunpack.c.h.bf16 %v279
        %v322 = vunpack.c.l.bf16 %v280
        %v323 = vunpack.c.h.bf16 %v280
        %v324 = vunpack.c.l.bf16 %v281
        %v325 = vunpack.c.h.bf16 %v281
        %v326 = vunpack.c.l.bf16 %v282
        %v327 = vunpack.c.h.bf16 %v282
        %v328 = vunpack.c.l.bf16 %v283
        %v329 = vunpack.c.h.bf16 %v283
        %v330 = vunpack.c.l.bf16 %v284
        %v331 = vunpack.c.h.bf16 %v284
        %v332 = vunpack.c.l.bf16 %v285
        %v333 = vunpack.c.h.bf16 %v285
        %v334 = vunpack.c.l.bf16 %v286
        %v335 = vunpack.c.h.bf16 %v286
        %v336 = vunpack.c.l.bf16 %v287
        %v337 = vunpack.c.h.bf16 %v287
        %v338 = vunpack.c.l.bf16 %v288
        %v339 = vunpack.c.h.bf16 %v288
        %v340 = vunpack.c.l.bf16 %v289
        %v341 = vunpack.c.h.bf16 %v289
        %v342 = vunpack.c.l.bf16 %v290
        %v343 = vunpack.c.h.bf16 %v290
        %v344 = vunpack.c.l.bf16 %v291
        %v345 = vunpack.c.h.bf16 %v291
        %v346 = vunpack.c.l.bf16 %v292
        %v347 = vunpack.c.h.bf16 %v292
        %v348 = vunpack.c.l.bf16 %v293
        %v349 = vunpack.c.h.bf16 %v293
        %v350 = vunpack.c.l.bf16 %v294
        %v351 = vunpack.c.h.bf16 %v294
        %v352 = vunpack.c.l.bf16 %v295
        %v353 = vunpack.c.h.bf16 %v295
        %v354 = vunpack.c.l.bf16 %v296
        %v355 = vunpack.c.h.bf16 %v296
        %v356 = vunpack.c.l.bf16 %v297
        %v357 = vunpack.c.h.bf16 %v297
        %v358 = vunpack.c.l.bf16 %v298
        %v359 = vunpack.c.h.bf16 %v298
        %v360 = vunpack.c.l.bf16 %v299
        %v361 = vunpack.c.h.bf16 %v299
        %v362 = vunpack.c.l.bf16 %v300
        %v363 = vunpack.c.h.bf16 %v300
        %v364 = vunpack.c.l.bf16 %v301
        %v365 = vunpack.c.h.bf16 %v301
        loop: start=0, step=1, limit=2
        $region41: #{tpu_custom_call.1} parent=31 // loop_pre_header
          _
        $region42: #{tpu_custom_call.1} parent=31 // loop_header
          %s367 = sphi 0, %s371
          %p368 = scmp.ge.s32.totalorder %s367, 2
        $region43: #{tpu_custom_call.1} parent=31 // loop_header_branch
          %370 = sbr.rel (%p368) target = $region47
        $region44: #{tpu_custom_call.1} parent=31 // loop_body
          %s372 = smul.u32 %s367, 4
          %s373 = smul.addr %s372, 4
          %s374 = scalar_lea.vmem %s217, %s373 [#allocation2]
          %v375 = vld [vmem:[%s374] sm:$0xff]
          %v376 = vld [vmem:[%s374 + $0x8] sm:$0xff]
          %v380 = vunpack.c.l.b16 %v267
          %v381 = vunpack.c.l.b16 %v268
          %v382 = vunpack.c.l.b16 %v269
          %v383 = vpack.c.b16 %v381, %v380
          %v384 = vpack.c.b16 %v382, %v382
          %v387 = vunpack.c.l.b16 %v375
          %v388 = vunpack.c.h.b16 %v375
          %v389 = vunpack.c.l.b16 %v376
          %v390 = vunpack.c.h.b16 %v376
          %v391 = vpack.c.b16 %v389, %v387
          %v392 = vpack.c.b16 %v390, %v388
          %vm395 = vcmask 130048
          %v397 = vsel %vm395, %v383, 0
          %v400 = vsel %vm395, %v384, 0
          %402 = vmatprep.subr.bf16.mxu0 0
          %403 = vmatpush1.bf16.msra.mxu0 0
          %404 = vmatprep.subr.bf16.mxu0 0
          %405 = vmatpush1.bf16.msra.mxu0 0
          %406 = vmatprep.subr.bf16.mxu0 0
          %407 = vmatpush1.bf16.msra.mxu0 0
          %408 = vmatprep.subr.bf16.mxu0 0
          %409 = vmatpush1.bf16.msra.mxu0 0
          %410 = vmatprep.subr.bf16.mxu0 0
          %411 = vmatpush1.bf16.msra.mxu0 0
          %412 = vmatprep.subr.bf16.mxu0 0
          %413 = vmatpush1.bf16.msra.mxu0 0
          %414 = vmatprep.subr.bf16.mxu0 0
          %415 = vmatpush1.bf16.msra.mxu0 0
          %416 = vmatprep.subr.bf16.mxu0 %v392
          %417 = vmatpush1.bf16.msra.mxu0 %v391
          %418 = vmatprep.subr.bf16.mxu0 0
          %419 = vmatpush2.bf16.msra.mxu0 0
          %420 = vmatprep.subr.bf16.mxu0 0
          %421 = vmatpush2.bf16.msra.mxu0 0
          %422 = vmatprep.subr.bf16.mxu0 0
          %423 = vmatpush2.bf16.msra.mxu0 0
          %424 = vmatprep.subr.bf16.mxu0 0
          %425 = vmatpush2.bf16.msra.mxu0 0
          %426 = vmatprep.subr.bf16.mxu0 0
          %427 = vmatpush2.bf16.msra.mxu0 0
          %428 = vmatprep.subr.bf16.mxu0 0
          %429 = vmatpush2.bf16.msra.mxu0 0
          %430 = vmatprep.subr.bf16.mxu0 0
          %431 = vmatpush2.bf16.msra.mxu0 0
          %432 = vmatprep.subr.bf16.mxu0 0
          %433 = vmatpush2.bf16.msra.mxu0 0
          %434 = vmatprep.mubr.bf16.mxu0 0
          %435 = vmatmul.mubr.bf16.gmra.mxu0 %v397
          %v436 = vpop.f32.mrf.mxu0
          %v437 = vadd.f32 0.0, %v436
          %v438 = vpop.f32.mrf.mxu0
          %v439 = vadd.f32 0.0, %v438
          %v440 = vpop.f32.mrf.mxu0
          %v441 = vadd.f32 0.0, %v440
          %v442 = vpop.f32.mrf.mxu0
          %v443 = vadd.f32 0.0, %v442
          %444 = vmatprep.mubr.bf16.mxu0 0
          %445 = vmatmul.mubr.bf16.gmra.mxu0 %v400
          %v446 = vpop.f32.mrf.mxu0
          %v447 = vadd.f32 0.0, %v446
          %v448 = vpop.f32.mrf.mxu0
          %v449 = vadd.f32 0.0, %v448
          %v450 = vpop.f32.mrf.mxu0
          %v451 = vpop.f32.mrf.mxu0
          %452 = vdwg.mxu0
          %v453 = vpack.c.bf16 %v437, %v437
          %v454 = vpack.c.bf16 %v439, %v439
          %v455 = vpack.c.bf16 %v441, %v441
          %v456 = vpack.c.bf16 %v443, %v443
          %v457 = vpack.c.bf16 %v447, %v447
          %v458 = vpack.c.bf16 %v449, %v449
          %459 = vxpose.xlu0.c.b16.start [1/8] %v455, 128
          %460 = vxpose.xlu0.c.b16.cont [2/8] 0, 128
          %461 = vxpose.xlu0.c.b16.cont [3/8] 0, 128
          %462 = vxpose.xlu0.c.b16.cont [4/8] 0, 128
          %463 = vxpose.xlu0.c.b16.cont [5/8] 0, 128
          %464 = vxpose.xlu0.c.b16.cont [6/8] 0, 128
          %465 = vxpose.xlu0.c.b16.cont [7/8] 0, 128
          %466 = vxpose.xlu0.c.b16.end [8/8] 0, 128
          %v467 = vpop.trf.xlu0
          %v468 = vpop.trf.xlu0
          %v469 = vpop.trf.xlu0
          %v470 = vpop.trf.xlu0
          %v471 = vpop.trf.xlu0
          %v472 = vpop.trf.xlu0
          %v473 = vpop.trf.xlu0
          %v474 = vpop.trf.xlu0
          %475 = vxpose.xlu0.c.b16.start [1/8] %v456, 128
          %476 = vxpose.xlu0.c.b16.cont [2/8] 0, 128
          %477 = vxpose.xlu0.c.b16.cont [3/8] 0, 128
          %478 = vxpose.xlu0.c.b16.cont [4/8] 0, 128
          %479 = vxpose.xlu0.c.b16.cont [5/8] 0, 128
          %480 = vxpose.xlu0.c.b16.cont [6/8] 0, 128
          %481 = vxpose.xlu0.c.b16.cont [7/8] 0, 128
          %482 = vxpose.xlu0.c.b16.end [8/8] 0, 128
          %v483 = vpop.trf.xlu0
          %v484 = vpop.trf.xlu0
          %v485 = vpop.trf.xlu0
          %v486 = vpop.trf.xlu0
          %v487 = vpop.trf.xlu0
          %v488 = vpop.trf.xlu0
          %v489 = vpop.trf.xlu0
          %v490 = vpop.trf.xlu0
          %vm491 = vcmask 64512
          %v493 = vsel %vm491, %v467, 0
          %v496 = vsel %vm491, %v468, 0
          %v499 = vsel %vm491, %v469, 0
          %v502 = vsel %vm491, %v470, 0
          %v505 = vsel %vm491, %v471, 0
          %v508 = vsel %vm491, %v472, 0
          %v511 = vsel %vm491, %v473, 0
          %v514 = vsel %vm491, %v474, 0
          %v517 = vsel %vm491, %v483, 0
          %v520 = vsel %vm491, %v484, 0
          %v523 = vsel %vm491, %v485, 0
          %v526 = vsel %vm491, %v486, 0
          %v529 = vsel %vm491, %v487, 0
          %v532 = vsel %vm491, %v488, 0
          %v535 = vsel %vm491, %v489, 0
          %v538 = vsel %vm491, %v490, 0
          %vm540 = vcmask 1043456
          %v542 = vsel %vm540, %v453, 0
          %v545 = vsel %vm540, %v454, 0
          %547 = vmatprep.subr.bf16.mxu0 0
          %548 = vmatpush1.bf16.msra.mxu0 0
          %549 = vmatprep.subr.bf16.mxu0 0
          %550 = vmatpush1.bf16.msra.mxu0 0
          %551 = vmatprep.subr.bf16.mxu0 0
          %552 = vmatpush1.bf16.msra.mxu0 0
          %553 = vmatprep.subr.bf16.mxu0 0
          %554 = vmatpush1.bf16.msra.mxu0 0
          %555 = vmatprep.subr.bf16.mxu0 0
          %556 = vmatpush1.bf16.msra.mxu0 0
          %557 = vmatprep.subr.bf16.mxu0 0
          %558 = vmatpush1.bf16.msra.mxu0 0
          %559 = vmatprep.subr.bf16.mxu0 0
          %560 = vmatpush1.bf16.msra.mxu0 0
          %561 = vmatprep.subr.bf16.mxu0 %v545
          %562 = vmatpush1.bf16.msra.mxu0 %v542
          %563 = vmatprep.subr.bf16.mxu0 0
          %564 = vmatpush2.bf16.msra.mxu0 0
          %565 = vmatprep.subr.bf16.mxu0 0
          %566 = vmatpush2.bf16.msra.mxu0 0
          %567 = vmatprep.subr.bf16.mxu0 0
          %568 = vmatpush2.bf16.msra.mxu0 0
          %569 = vmatprep.subr.bf16.mxu0 0
          %570 = vmatpush2.bf16.msra.mxu0 0
          %571 = vmatprep.subr.bf16.mxu0 0
          %572 = vmatpush2.bf16.msra.mxu0 0
          %573 = vmatprep.subr.bf16.mxu0 0
          %574 = vmatpush2.bf16.msra.mxu0 0
          %575 = vmatprep.subr.bf16.mxu0 0
          %576 = vmatpush2.bf16.msra.mxu0 0
          %577 = vmatprep.subr.bf16.mxu0 0
          %578 = vmatpush2.bf16.msra.mxu0 0
          %579 = vmatprep.mubr.bf16.mxu0 0
          %580 = vmatmul.mubr.bf16.gmra.mxu0 %v493
          %v581 = vpop.f32.mrf.mxu0
          %v582 = vadd.f32 %v302, %v581
          %v583 = vpop.f32.mrf.mxu0
          %v584 = vadd.f32 %v303, %v583
          %v585 = vpop.f32.mrf.mxu0
          %v586 = vadd.f32 %v304, %v585
          %v587 = vpop.f32.mrf.mxu0
          %v588 = vadd.f32 %v305, %v587
          %589 = vmatprep.mubr.bf16.mxu0 0
          %590 = vmatmul.mubr.bf16.gmra.mxu0 %v496
          %v591 = vpop.f32.mrf.mxu0
          %v592 = vadd.f32 %v306, %v591
          %v593 = vpop.f32.mrf.mxu0
          %v594 = vadd.f32 %v307, %v593
          %v595 = vpop.f32.mrf.mxu0
          %v596 = vadd.f32 %v308, %v595
          %v597 = vpop.f32.mrf.mxu0
          %v598 = vadd.f32 %v309, %v597
          %599 = vmatprep.mubr.bf16.mxu0 0
          %600 = vmatmul.mubr.bf16.gmra.mxu0 %v499
          %v601 = vpop.f32.mrf.mxu0
          %v602 = vadd.f32 %v310, %v601
          %v603 = vpop.f32.mrf.mxu0
          %v604 = vadd.f32 %v311, %v603
          %v605 = vpop.f32.mrf.mxu0
          %v606 = vadd.f32 %v312, %v605
          %v607 = vpop.f32.mrf.mxu0
          %v608 = vadd.f32 %v313, %v607
          %609 = vmatprep.mubr.bf16.mxu0 0
          %610 = vmatmul.mubr.bf16.gmra.mxu0 %v502
          %v611 = vpop.f32.mrf.mxu0
          %v612 = vadd.f32 %v314, %v611
          %v613 = vpop.f32.mrf.mxu0
          %v614 = vadd.f32 %v315, %v613
          %v615 = vpop.f32.mrf.mxu0
          %v616 = vadd.f32 %v316, %v615
          %v617 = vpop.f32.mrf.mxu0
          %v618 = vadd.f32 %v317, %v617
          %619 = vmatprep.mubr.bf16.mxu0 0
          %620 = vmatmul.mubr.bf16.gmra.mxu0 %v505
          %v621 = vpop.f32.mrf.mxu0
          %v622 = vadd.f32 %v318, %v621
          %v623 = vpop.f32.mrf.mxu0
          %v624 = vadd.f32 %v319, %v623
          %v625 = vpop.f32.mrf.mxu0
          %v626 = vadd.f32 %v320, %v625
          %v627 = vpop.f32.mrf.mxu0
          %v628 = vadd.f32 %v321, %v627
          %629 = vmatprep.mubr.bf16.mxu0 0
          %630 = vmatmul.mubr.bf16.gmra.mxu0 %v508
          %v631 = vpop.f32.mrf.mxu0
          %v632 = vadd.f32 %v322, %v631
          %v633 = vpop.f32.mrf.mxu0
          %v634 = vadd.f32 %v323, %v633
          %v635 = vpop.f32.mrf.mxu0
          %v636 = vadd.f32 %v324, %v635
          %v637 = vpop.f32.mrf.mxu0
          %v638 = vadd.f32 %v325, %v637
          %639 = vmatprep.mubr.bf16.mxu0 0
          %640 = vmatmul.mubr.bf16.gmra.mxu0 %v511
          %v641 = vpop.f32.mrf.mxu0
          %v642 = vadd.f32 %v326, %v641
          %v643 = vpop.f32.mrf.mxu0
          %v644 = vadd.f32 %v327, %v643
          %v645 = vpop.f32.mrf.mxu0
          %v646 = vadd.f32 %v328, %v645
          %v647 = vpop.f32.mrf.mxu0
          %v648 = vadd.f32 %v329, %v647
          %649 = vmatprep.mubr.bf16.mxu0 0
          %650 = vmatmul.mubr.bf16.gmra.mxu0 %v514
          %v651 = vpop.f32.mrf.mxu0
          %v652 = vadd.f32 %v330, %v651
          %v653 = vpop.f32.mrf.mxu0
          %v654 = vadd.f32 %v331, %v653
          %v655 = vpop.f32.mrf.mxu0
          %v656 = vadd.f32 %v332, %v655
          %v657 = vpop.f32.mrf.mxu0
          %v658 = vadd.f32 %v333, %v657
          %659 = vmatprep.mubr.bf16.mxu0 0
          %660 = vmatmul.mubr.bf16.gmra.mxu0 %v517
          %v661 = vpop.f32.mrf.mxu0
          %v662 = vadd.f32 %v334, %v661
          %v663 = vpop.f32.mrf.mxu0
          %v664 = vadd.f32 %v335, %v663
          %v665 = vpop.f32.mrf.mxu0
          %v666 = vadd.f32 %v336, %v665
          %v667 = vpop.f32.mrf.mxu0
          %v668 = vadd.f32 %v337, %v667
          %669 = vmatprep.mubr.bf16.mxu0 0
          %670 = vmatmul.mubr.bf16.gmra.mxu0 %v520
          %v671 = vpop.f32.mrf.mxu0
          %v672 = vadd.f32 %v338, %v671
          %v673 = vpop.f32.mrf.mxu0
          %v674 = vadd.f32 %v339, %v673
          %v675 = vpop.f32.mrf.mxu0
          %v676 = vadd.f32 %v340, %v675
          %v677 = vpop.f32.mrf.mxu0
          %v678 = vadd.f32 %v341, %v677
          %679 = vmatprep.mubr.bf16.mxu0 0
          %680 = vmatmul.mubr.bf16.gmra.mxu0 %v523
          %v681 = vpop.f32.mrf.mxu0
          %v682 = vadd.f32 %v342, %v681
          %v683 = vpop.f32.mrf.mxu0
          %v684 = vadd.f32 %v343, %v683
          %v685 = vpop.f32.mrf.mxu0
          %v686 = vadd.f32 %v344, %v685
          %v687 = vpop.f32.mrf.mxu0
          %v688 = vadd.f32 %v345, %v687
          %689 = vmatprep.mubr.bf16.mxu0 0
          %690 = vmatmul.mubr.bf16.gmra.mxu0 %v526
          %v691 = vpop.f32.mrf.mxu0
          %v692 = vadd.f32 %v346, %v691
          %v693 = vpop.f32.mrf.mxu0
          %v694 = vadd.f32 %v347, %v693
          %v695 = vpop.f32.mrf.mxu0
          %v696 = vadd.f32 %v348, %v695
          %v697 = vpop.f32.mrf.mxu0
          %v698 = vadd.f32 %v349, %v697
          %699 = vmatprep.mubr.bf16.mxu0 0
          %700 = vmatmul.mubr.bf16.gmra.mxu0 %v529
          %v701 = vpop.f32.mrf.mxu0
          %v702 = vadd.f32 %v350, %v701
          %v703 = vpop.f32.mrf.mxu0
          %v704 = vadd.f32 %v351, %v703
          %v705 = vpop.f32.mrf.mxu0
          %v706 = vadd.f32 %v352, %v705
          %v707 = vpop.f32.mrf.mxu0
          %v708 = vadd.f32 %v353, %v707
          %709 = vmatprep.mubr.bf16.mxu0 0
          %710 = vmatmul.mubr.bf16.gmra.mxu0 %v532
          %v711 = vpop.f32.mrf.mxu0
          %v712 = vadd.f32 %v354, %v711
          %v713 = vpop.f32.mrf.mxu0
          %v714 = vadd.f32 %v355, %v713
          %v715 = vpop.f32.mrf.mxu0
          %v716 = vadd.f32 %v356, %v715
          %v717 = vpop.f32.mrf.mxu0
          %v718 = vadd.f32 %v357, %v717
          %719 = vmatprep.mubr.bf16.mxu0 0
          %720 = vmatmul.mubr.bf16.gmra.mxu0 %v535
          %v721 = vpop.f32.mrf.mxu0
          %v722 = vadd.f32 %v358, %v721
          %v723 = vpop.f32.mrf.mxu0
          %v724 = vadd.f32 %v359, %v723
          %v725 = vpop.f32.mrf.mxu0
          %v726 = vadd.f32 %v360, %v725
          %v727 = vpop.f32.mrf.mxu0
          %v728 = vadd.f32 %v361, %v727
          %729 = vmatprep.mubr.bf16.mxu0 0
          %730 = vmatmul.mubr.bf16.gmra.mxu0 %v538
          %v731 = vpop.f32.mrf.mxu0
          %v732 = vadd.f32 %v362, %v731
          %v733 = vpop.f32.mrf.mxu0
          %v734 = vadd.f32 %v363, %v733
          %v735 = vpop.f32.mrf.mxu0
          %v736 = vadd.f32 %v364, %v735
          %v737 = vpop.f32.mrf.mxu0
          %v738 = vadd.f32 %v365, %v737
          %739 = vdwg.mxu0
          %v740 = vmax.f32 %v582, %v592
          %v741 = vmax.f32 %v586, %v596
          %v742 = vmax.f32 %v740, %v602
          %v743 = vmax.f32 %v741, %v606
          %v744 = vmax.f32 %v742, %v612
          %v745 = vmax.f32 %v743, %v616
          %v746 = vmax.f32 %v744, %v622
          %v747 = vmax.f32 %v745, %v626
          %v748 = vmax.f32 %v746, %v632
          %v749 = vmax.f32 %v747, %v636
          %v750 = vmax.f32 %v748, %v642
          %v751 = vmax.f32 %v749, %v646
          %v752 = vmax.f32 %v750, %v652
          %v753 = vmax.f32 %v751, %v656
          %v754 = vmax.f32 %v752, %v662
          %v755 = vmax.f32 %v753, %v666
          %v756 = vmax.f32 %v754, %v672
          %v757 = vmax.f32 %v755, %v676
          %v758 = vmax.f32 %v756, %v682
          %v759 = vmax.f32 %v757, %v686
          %v760 = vmax.f32 %v758, %v692
          %v761 = vmax.f32 %v759, %v696
          %v762 = vmax.f32 %v760, %v702
          %v763 = vmax.f32 %v761, %v706
          %v764 = vmax.f32 %v762, %v712
          %v765 = vmax.f32 %v763, %v716
          %v766 = vmax.f32 %v764, %v722
          %v767 = vmax.f32 %v765, %v726
          %v768 = vmax.f32 %v766, %v732
          %v769 = vmax.f32 %v767, %v736
          %v770 = vmax.f32 %v768, %v769
          %v771 = vrot.slane %v770, 4
          %v772 = vmax.f32 %v770, %v771
          %v773 = vrot.slane %v772, 2
          %v774 = vmax.f32 %v772, %v773
          %v775 = vrot.slane %v774, 1
          %v776 = vmax.f32 %v774, %v775
          %v777 = vmax.f32 %v584, %v594
          %v778 = vmax.f32 %v588, %v598
          %v779 = vmax.f32 %v777, %v604
          %v780 = vmax.f32 %v778, %v608
          %v781 = vmax.f32 %v779, %v614
          %v782 = vmax.f32 %v780, %v618
          %v783 = vmax.f32 %v781, %v624
          %v784 = vmax.f32 %v782, %v628
          %v785 = vmax.f32 %v783, %v634
          %v786 = vmax.f32 %v784, %v638
          %v787 = vmax.f32 %v785, %v644
          %v788 = vmax.f32 %v786, %v648
          %v789 = vmax.f32 %v787, %v654
          %v790 = vmax.f32 %v788, %v658
          %v791 = vmax.f32 %v789, %v664
          %v792 = vmax.f32 %v790, %v668
          %v793 = vmax.f32 %v791, %v674
          %v794 = vmax.f32 %v792, %v678
          %v795 = vmax.f32 %v793, %v684
          %v796 = vmax.f32 %v794, %v688
          %v797 = vmax.f32 %v795, %v694
          %v798 = vmax.f32 %v796, %v698
          %v799 = vmax.f32 %v797, %v704
          %v800 = vmax.f32 %v798, %v708
          %v801 = vmax.f32 %v799, %v714
          %v802 = vmax.f32 %v800, %v718
          %v803 = vmax.f32 %v801, %v724
          %v804 = vmax.f32 %v802, %v728
          %v805 = vmax.f32 %v803, %v734
          %v806 = vmax.f32 %v804, %v738
          %v807 = vmax.f32 %v805, %v806
          %v808 = vrot.slane %v807, 4
          %v809 = vmax.f32 %v807, %v808
          %v810 = vrot.slane %v809, 2
          %v811 = vmax.f32 %v809, %v810
          %v812 = vrot.slane %v811, 1
          %v813 = vmax.f32 %v811, %v812
          %v814 = vsub.f32 %v582, %v776
          %v815 = vsub.f32 %v584, %v813
          %v816 = vsub.f32 %v586, %v776
          %v817 = vsub.f32 %v588, %v813
          %v818 = vsub.f32 %v592, %v776
          %v819 = vsub.f32 %v594, %v813
          %v820 = vsub.f32 %v596, %v776
          %v821 = vsub.f32 %v598, %v813
          %v822 = vsub.f32 %v602, %v776
          %v823 = vsub.f32 %v604, %v813
          %v824 = vsub.f32 %v606, %v776
          %v825 = vsub.f32 %v608, %v813
          %v826 = vsub.f32 %v612, %v776
          %v827 = vsub.f32 %v614, %v813
          %v828 = vsub.f32 %v616, %v776
          %v829 = vsub.f32 %v618, %v813
          %v830 = vsub.f32 %v622, %v776
          %v831 = vsub.f32 %v624, %v813
          %v832 = vsub.f32 %v626, %v776
          %v833 = vsub.f32 %v628, %v813
          %v834 = vsub.f32 %v632, %v776
          %v835 = vsub.f32 %v634, %v813
          %v836 = vsub.f32 %v636, %v776
          %v837 = vsub.f32 %v638, %v813
          %v838 = vsub.f32 %v642, %v776
          %v839 = vsub.f32 %v644, %v813
          %v840 = vsub.f32 %v646, %v776
          %v841 = vsub.f32 %v648, %v813
          %v842 = vsub.f32 %v652, %v776
          %v843 = vsub.f32 %v654, %v813
          %v844 = vsub.f32 %v656, %v776
          %v845 = vsub.f32 %v658, %v813
          %v846 = vsub.f32 %v662, %v776
          %v847 = vsub.f32 %v664, %v813
          %v848 = vsub.f32 %v666, %v776
          %v849 = vsub.f32 %v668, %v813
          %v850 = vsub.f32 %v672, %v776
          %v851 = vsub.f32 %v674, %v813
          %v852 = vsub.f32 %v676, %v776
          %v853 = vsub.f32 %v678, %v813
          %v854 = vsub.f32 %v682, %v776
          %v855 = vsub.f32 %v684, %v813
          %v856 = vsub.f32 %v686, %v776
          %v857 = vsub.f32 %v688, %v813
          %v858 = vsub.f32 %v692, %v776
          %v859 = vsub.f32 %v694, %v813
          %v860 = vsub.f32 %v696, %v776
          %v861 = vsub.f32 %v698, %v813
          %v862 = vsub.f32 %v702, %v776
          %v863 = vsub.f32 %v704, %v813
          %v864 = vsub.f32 %v706, %v776
          %v865 = vsub.f32 %v708, %v813
          %v866 = vsub.f32 %v712, %v776
          %v867 = vsub.f32 %v714, %v813
          %v868 = vsub.f32 %v716, %v776
          %v869 = vsub.f32 %v718, %v813
          %v870 = vsub.f32 %v722, %v776
          %v871 = vsub.f32 %v724, %v813
          %v872 = vsub.f32 %v726, %v776
          %v873 = vsub.f32 %v728, %v813
          %v874 = vsub.f32 %v732, %v776
          %v875 = vsub.f32 %v734, %v813
          %v876 = vsub.f32 %v736, %v776
          %v877 = vsub.f32 %v738, %v813
          %v878 = vmul.f32 %v814, 1.442695
          %v879 = vpow.pop %v878
          %v880 = vmul.f32 %v815, 1.442695
          %v881 = vpow.pop %v880
          %v882 = vmul.f32 %v816, 1.442695
          %v883 = vpow.pop %v882
          %v884 = vmul.f32 %v817, 1.442695
          %v885 = vpow.pop %v884
          %v886 = vmul.f32 %v818, 1.442695
          %v887 = vpow.pop %v886
          %v888 = vmul.f32 %v819, 1.442695
          %v889 = vpow.pop %v888
          %v890 = vmul.f32 %v820, 1.442695
          %v891 = vpow.pop %v890
          %v892 = vmul.f32 %v821, 1.442695
          %v893 = vpow.pop %v892
          %v894 = vmul.f32 %v822, 1.442695
          %v895 = vpow.pop %v894
          %v896 = vmul.f32 %v823, 1.442695
          %v897 = vpow.pop %v896
          %v898 = vmul.f32 %v824, 1.442695
          %v899 = vpow.pop %v898
          %v900 = vmul.f32 %v825, 1.442695
          %v901 = vpow.pop %v900
          %v902 = vmul.f32 %v826, 1.442695
          %v903 = vpow.pop %v902
          %v904 = vmul.f32 %v827, 1.442695
          %v905 = vpow.pop %v904
          %v906 = vmul.f32 %v828, 1.442695
          %v907 = vpow.pop %v906
          %v908 = vmul.f32 %v829, 1.442695
          %v909 = vpow.pop %v908
          %v910 = vmul.f32 %v830, 1.442695
          %v911 = vpow.pop %v910
          %v912 = vmul.f32 %v831, 1.442695
          %v913 = vpow.pop %v912
          %v914 = vmul.f32 %v832, 1.442695
          %v915 = vpow.pop %v914
          %v916 = vmul.f32 %v833, 1.442695
          %v917 = vpow.pop %v916
          %v918 = vmul.f32 %v834, 1.442695
          %v919 = vpow.pop %v918
          %v920 = vmul.f32 %v835, 1.442695
          %v921 = vpow.pop %v920
          %v922 = vmul.f32 %v836, 1.442695
          %v923 = vpow.pop %v922
          %v924 = vmul.f32 %v837, 1.442695
          %v925 = vpow.pop %v924
          %v926 = vmul.f32 %v838, 1.442695
          %v927 = vpow.pop %v926
          %v928 = vmul.f32 %v839, 1.442695
          %v929 = vpow.pop %v928
          %v930 = vmul.f32 %v840, 1.442695
          %v931 = vpow.pop %v930
          %v932 = vmul.f32 %v841, 1.442695
          %v933 = vpow.pop %v932
          %v934 = vmul.f32 %v842, 1.442695
          %v935 = vpow.pop %v934
          %v936 = vmul.f32 %v843, 1.442695
          %v937 = vpow.pop %v936
          %v938 = vmul.f32 %v844, 1.442695
          %v939 = vpow.pop %v938
          %v940 = vmul.f32 %v845, 1.442695
          %v941 = vpow.pop %v940
          %v942 = vmul.f32 %v846, 1.442695
          %v943 = vpow.pop %v942
          %v944 = vmul.f32 %v847, 1.442695
          %v945 = vpow.pop %v944
          %v946 = vmul.f32 %v848, 1.442695
          %v947 = vpow.pop %v946
          %v948 = vmul.f32 %v849, 1.442695
          %v949 = vpow.pop %v948
          %v950 = vmul.f32 %v850, 1.442695
          %v951 = vpow.pop %v950
          %v952 = vmul.f32 %v851, 1.442695
          %v953 = vpow.pop %v952
          %v954 = vmul.f32 %v852, 1.442695
          %v955 = vpow.pop %v954
          %v956 = vmul.f32 %v853, 1.442695
          %v957 = vpow.pop %v956
          %v958 = vmul.f32 %v854, 1.442695
          %v959 = vpow.pop %v958
          %v960 = vmul.f32 %v855, 1.442695
          %v961 = vpow.pop %v960
          %v962 = vmul.f32 %v856, 1.442695
          %v963 = vpow.pop %v962
          %v964 = vmul.f32 %v857, 1.442695
          %v965 = vpow.pop %v964
          %v966 = vmul.f32 %v858, 1.442695
          %v967 = vpow.pop %v966
          %v968 = vmul.f32 %v859, 1.442695
          %v969 = vpow.pop %v968
          %v970 = vmul.f32 %v860, 1.442695
          %v971 = vpow.pop %v970
          %v972 = vmul.f32 %v861, 1.442695
          %v973 = vpow.pop %v972
          %v974 = vmul.f32 %v862, 1.442695
          %v975 = vpow.pop %v974
          %v976 = vmul.f32 %v863, 1.442695
          %v977 = vpow.pop %v976
          %v978 = vmul.f32 %v864, 1.442695
          %v979 = vpow.pop %v978
          %v980 = vmul.f32 %v865, 1.442695
          %v981 = vpow.pop %v980
          %v982 = vmul.f32 %v866, 1.442695
          %v983 = vpow.pop %v982
          %v984 = vmul.f32 %v867, 1.442695
          %v985 = vpow.pop %v984
          %v986 = vmul.f32 %v868, 1.442695
          %v987 = vpow.pop %v986
          %v988 = vmul.f32 %v869, 1.442695
          %v989 = vpow.pop %v988
          %v990 = vmul.f32 %v870, 1.442695
          %v991 = vpow.pop %v990
          %v992 = vmul.f32 %v871, 1.442695
          %v993 = vpow.pop %v992
          %v994 = vmul.f32 %v872, 1.442695
          %v995 = vpow.pop %v994
          %v996 = vmul.f32 %v873, 1.442695
          %v997 = vpow.pop %v996
          %v998 = vmul.f32 %v874, 1.442695
          %v999 = vpow.pop %v998
          %v1000 = vmul.f32 %v875, 1.442695
          %v1001 = vpow.pop %v1000
          %v1002 = vmul.f32 %v876, 1.442695
          %v1003 = vpow.pop %v1002
          %v1004 = vmul.f32 %v877, 1.442695
          %v1005 = vpow.pop %v1004
          %v1006 = vadd.f32 %v879, %v883
          %v1007 = vadd.f32 %v1006, %v887
          %v1008 = vadd.f32 %v1007, %v891
          %v1009 = vadd.f32 %v1008, %v895
          %v1010 = vadd.f32 %v1009, %v899
          %v1011 = vadd.f32 %v1010, %v903
          %v1012 = vadd.f32 %v1011, %v907
          %v1013 = vadd.f32 %v1012, %v911
          %v1014 = vadd.f32 %v1013, %v915
          %v1015 = vadd.f32 %v1014, %v919
          %v1016 = vadd.f32 %v1015, %v923
          %v1017 = vadd.f32 %v1016, %v927
          %v1018 = vadd.f32 %v1017, %v931
          %v1019 = vadd.f32 %v1018, %v935
          %v1020 = vadd.f32 %v1019, %v939
          %v1021 = vadd.f32 %v1020, %v943
          %v1022 = vadd.f32 %v1021, %v947
          %v1023 = vadd.f32 %v1022, %v951
          %v1024 = vadd.f32 %v1023, %v955
          %v1025 = vadd.f32 %v1024, %v959
          %v1026 = vadd.f32 %v1025, %v963
          %v1027 = vadd.f32 %v1026, %v967
          %v1028 = vadd.f32 %v1027, %v971
          %v1029 = vadd.f32 %v1028, %v975
          %v1030 = vadd.f32 %v1029, %v979
          %v1031 = vadd.f32 %v1030, %v983
          %v1032 = vadd.f32 %v1031, %v987
          %v1033 = vadd.f32 %v1032, %v991
          %v1034 = vadd.f32 %v1033, %v995
          %v1035 = vadd.f32 %v1034, %v999
          %v1036 = vadd.f32 %v1035, %v1003
          %v1037 = vrot.slane %v1036, 4
          %v1038 = vadd.f32 %v1036, %v1037
          %v1039 = vrot.slane %v1038, 2
          %v1040 = vadd.f32 %v1038, %v1039
          %v1041 = vrot.slane %v1040, 1
          %v1042 = vadd.f32 %v1040, %v1041
          %v1043 = vadd.f32 %v881, %v885
          %v1044 = vadd.f32 %v1043, %v889
          %v1045 = vadd.f32 %v1044, %v893
          %v1046 = vadd.f32 %v1045, %v897
          %v1047 = vadd.f32 %v1046, %v901
          %v1048 = vadd.f32 %v1047, %v905
          %v1049 = vadd.f32 %v1048, %v909
          %v1050 = vadd.f32 %v1049, %v913
          %v1051 = vadd.f32 %v1050, %v917
          %v1052 = vadd.f32 %v1051, %v921
          %v1053 = vadd.f32 %v1052, %v925
          %v1054 = vadd.f32 %v1053, %v929
          %v1055 = vadd.f32 %v1054, %v933
          %v1056 = vadd.f32 %v1055, %v937
          %v1057 = vadd.f32 %v1056, %v941
          %v1058 = vadd.f32 %v1057, %v945
          %v1059 = vadd.f32 %v1058, %v949
          %v1060 = vadd.f32 %v1059, %v953
          %v1061 = vadd.f32 %v1060, %v957
          %v1062 = vadd.f32 %v1061, %v961
          %v1063 = vadd.f32 %v1062, %v965
          %v1064 = vadd.f32 %v1063, %v969
          %v1065 = vadd.f32 %v1064, %v973
          %v1066 = vadd.f32 %v1065, %v977
          %v1067 = vadd.f32 %v1066, %v981
          %v1068 = vadd.f32 %v1067, %v985
          %v1069 = vadd.f32 %v1068, %v989
          %v1070 = vadd.f32 %v1069, %v993
          %v1071 = vadd.f32 %v1070, %v997
          %v1072 = vadd.f32 %v1071, %v1001
          %v1073 = vadd.f32 %v1072, %v1005
          %v1074 = vrot.slane %v1073, 4
          %v1075 = vadd.f32 %v1073, %v1074
          %v1076 = vrot.slane %v1075, 2
          %v1077 = vadd.f32 %v1075, %v1076
          %v1078 = vrot.slane %v1077, 1
          %v1079 = vadd.f32 %v1077, %v1078
          %v1080 = vpack.c.bf16 %v883, %v879
          %v1081 = vpack.c.bf16 %v885, %v881
          %v1082 = vpack.c.bf16 %v891, %v887
          %v1083 = vpack.c.bf16 %v893, %v889
          %v1084 = vpack.c.bf16 %v899, %v895
          %v1085 = vpack.c.bf16 %v901, %v897
          %v1086 = vpack.c.bf16 %v907, %v903
          %v1087 = vpack.c.bf16 %v909, %v905
          %v1088 = vpack.c.bf16 %v915, %v911
          %v1089 = vpack.c.bf16 %v917, %v913
          %v1090 = vpack.c.bf16 %v923, %v919
          %v1091 = vpack.c.bf16 %v925, %v921
          %v1092 = vpack.c.bf16 %v931, %v927
          %v1093 = vpack.c.bf16 %v933, %v929
          %v1094 = vpack.c.bf16 %v939, %v935
          %v1095 = vpack.c.bf16 %v941, %v937
          %v1096 = vpack.c.bf16 %v947, %v943
          %v1097 = vpack.c.bf16 %v949, %v945
          %v1098 = vpack.c.bf16 %v955, %v951
          %v1099 = vpack.c.bf16 %v957, %v953
          %v1100 = vpack.c.bf16 %v963, %v959
          %v1101 = vpack.c.bf16 %v965, %v961
          %v1102 = vpack.c.bf16 %v971, %v967
          %v1103 = vpack.c.bf16 %v973, %v969
          %v1104 = vpack.c.bf16 %v979, %v975
          %v1105 = vpack.c.bf16 %v981, %v977
          %v1106 = vpack.c.bf16 %v987, %v983
          %v1107 = vpack.c.bf16 %v989, %v985
          %v1108 = vpack.c.bf16 %v995, %v991
          %v1109 = vpack.c.bf16 %v997, %v993
          %v1110 = vpack.c.bf16 %v1003, %v999
          %v1111 = vpack.c.bf16 %v1005, %v1001
          %1112 = vmatprep.subr.bf16.mxu0 %v1095
          %1113 = vmatpush1.bf16.msra.mxu0 %v1094
          %1114 = vmatprep.subr.bf16.mxu0 %v1093
          %1115 = vmatpush1.bf16.msra.mxu0 %v1092
          %1116 = vmatprep.subr.bf16.mxu0 %v1091
          %1117 = vmatpush1.bf16.msra.mxu0 %v1090
          %1118 = vmatprep.subr.bf16.mxu0 %v1089
          %1119 = vmatpush1.bf16.msra.mxu0 %v1088
          %1120 = vmatprep.subr.bf16.mxu0 %v1087
          %1121 = vmatpush1.bf16.msra.mxu0 %v1086
          %1122 = vmatprep.subr.bf16.mxu0 %v1085
          %1123 = vmatpush1.bf16.msra.mxu0 %v1084
          %1124 = vmatprep.subr.bf16.mxu0 %v1083
          %1125 = vmatpush1.bf16.msra.mxu0 %v1082
          %1126 = vmatprep.subr.bf16.mxu0 %v1081
          %1127 = vmatpush1.bf16.msra.mxu0 %v1080
          %1128 = vmatprep.subr.bf16.mxu0 %v1111
          %1129 = vmatpush2.bf16.msra.mxu0 %v1110
          %1130 = vmatprep.subr.bf16.mxu0 %v1109
          %1131 = vmatpush2.bf16.msra.mxu0 %v1108
          %1132 = vmatprep.subr.bf16.mxu0 %v1107
          %1133 = vmatpush2.bf16.msra.mxu0 %v1106
          %1134 = vmatprep.subr.bf16.mxu0 %v1105
          %1135 = vmatpush2.bf16.msra.mxu0 %v1104
          %1136 = vmatprep.subr.bf16.mxu0 %v1103
          %1137 = vmatpush2.bf16.msra.mxu0 %v1102
          %1138 = vmatprep.subr.bf16.mxu0 %v1101
          %1139 = vmatpush2.bf16.msra.mxu0 %v1100
          %1140 = vmatprep.subr.bf16.mxu0 %v1099
          %1141 = vmatpush2.bf16.msra.mxu0 %v1098
          %1142 = vmatprep.subr.bf16.mxu0 %v1097
          %1143 = vmatpush2.bf16.msra.mxu0 %v1096
          %1144 = vmatprep.mubr.bf16.mxu0 %v458
          %1145 = vmatmul.mubr.bf16.gmra.mxu0 %v457
          %v1146 = vpop.f32.mrf.mxu0
          %v1147 = vadd.f32 0.0, %v1146
          %v1148 = vpop.f32.mrf.mxu0
          %v1149 = vadd.f32 0.0, %v1148
          %v1150 = vpop.f32.mrf.mxu0
          %v1151 = vpop.f32.mrf.mxu0
          %1152 = vdwg.mxu0
          %v1153 = vrcp.pop %v1042
          %v1154 = vrcp.pop %v1079
          %v1155 = vmul.f32 %v1147, %v1153
          %v1156 = vmul.f32 %v1149, %v1154
          %v1157 = vpack.c.bf16 %v1155, %v1155
          %v1158 = vpack.c.bf16 %v1156, %v1156
          %v1161 = vunpack.c.l.b16 %v1157
          %v1162 = vunpack.c.l.b16 %v1158
          %v1163 = vpack.c.b16 %v1162, %v1161
          %s1165 = smul.u32 %s367, 2
          %s1166 = smul.addr %s1165, 4
          %s1167 = scalar_lea.vmem %s258, %s1166 [#allocation7]
          %1168 = vst [vmem:[%s1167] sm:$0xff] %v1163
        $region45: #{tpu_custom_call.1} parent=31 // loop_footer
          %s371 = sadd.s32 1, %s367
        $region46: #{tpu_custom_call.1} parent=31 // loop_footer_branch
          %366 = sbr.rel target = $region42
        $region47: #{tpu_custom_call.1} parent=31 // loop_exit
          _
        %s1169 = sand.u32 %s123, 1
        %s1170 = scalar_lea.sflag [#allocation4], %s1169
        %s1171 = sand.u32 %s123, 1
        %s1172 = smul.addr %s1171, 16
        %s1173 = scalar_lea.vmem [#allocation7], %s1172
        // Predicated region
        $region48: #{tpu_custom_call.1} parent=31 // pred_check
          %p1174 = pneg %p133
        $region49: #{tpu_custom_call.1} parent=31 // pred_check_branch
          %1176 = sbr.rel (%p1174) target = $region51
        $region50: #{tpu_custom_call.1} parent=31 // pred_region
          %s1177 = smul.u32 2, %s28
          %s1179 = ssub.s32 256, 256
          %1180 = vsyncadd %s1170, %s1179
          %s1181 = smul.addr %s27, 2
          %s1182 = smul.addr %s1177, 4
          %s1183 = sadd.s32 %s1181, %s1182
          %s1184 = smul.addr %s1183, 64
          %s1185 = scalar_lea.hbm %s3, %s1184
          %s1186 = sshll.u32 %s1173, 4
          %s1187 = int_to_ptr.vmem [resolvable:$true] %s1186
          %1192 = dma.vmem_to_hbm [thread:$0]  %s1187, 256, %s1185, %s1170, 128, 256, 8
        $region51: #{tpu_custom_call.1} parent=31 // pred_fallthru
          _
      $region32: #{tpu_custom_call.1} parent=5 // pred_fallthru
        _
      %p1193 = scmp.le.s32.totalorder 2, %s18
      // Predicated region
      $region52: #{tpu_custom_call.1} parent=5 // pred_check
        %p1194 = pneg %p1193
      $region53: #{tpu_custom_call.1} parent=5 // pred_check_branch
        %1196 = sbr.rel (%p1194) target = $region55
      $region54: #{tpu_custom_call.1} parent=5 // pred_region
        %s1197 = ssub.s32 %s18, 2
        // Predicated region
        $region56: #{tpu_custom_call.1} parent=54 // pred_check
          %p1198 = pneg %p139
        $region57: #{tpu_custom_call.1} parent=54 // pred_check_branch
          %1200 = sbr.rel (%p1198) target = $region59
        $region58: #{tpu_custom_call.1} parent=54 // pred_region
          %s1201 = sand.u32 %s124, 1
          %s1202 = scalar_lea.sflag [#allocation4], %s1201
          %s1203 = sand.u32 %s124, 1
          %s1204 = smul.addr %s1203, 16
          %s1205 = scalar_lea.vmem [#allocation7], %s1204
          %1206 = dma.done %s1202, 256
        $region59: #{tpu_custom_call.1} parent=54 // pred_fallthru
          _
      $region55: #{tpu_custom_call.1} parent=5 // pred_fallthru
        _
    $region6: #{tpu_custom_call.1} parent=1 // loop_footer
      %s22 = sadd.s32 1, %s18
    $region7: #{tpu_custom_call.1} parent=1 // loop_footer_branch
      %17 = sbr.rel target = $region3
    $region8: #{tpu_custom_call.1} parent=1 // loop_exit
      _
    %1207 = vsyncpa [#allocation3], 1
    %s1208 = scalar_lea.sflag [#allocation3], 1
    %1209 = vsyncpa %s1208, 1
    %1210 = vsyncpa [#allocation6], 1
    %s1211 = scalar_lea.sflag [#allocation6], 1
    %1212 = vsyncpa %s1211, 1
    %1213 = vsyncpa [#allocation4], 1
    %s1214 = scalar_lea.sflag [#allocation4], 1
    %1215 = vsyncpa %s1214, 1

</llo_original>
